<compile_context>
chip_gen: v7x
topology: tpu7x:2x2x1
jax: 0.10.0
libtpu: 0.0.40
codegen_flags: <defaults>
</compile_context>

<pallas_src>
import math
from functools import partial

import jax
import jax.numpy as jnp
from jax import lax
from jax.experimental import pallas as pl
from jax.experimental.pallas import tpu as pltpu


# ----------------------------------------------------------------------------
# helpers
# ----------------------------------------------------------------------------
def _pick_tile(dim, cap, aligns):
    """Largest divisor of `dim` that is <= cap and a multiple of one of `aligns`.
    Falls back to the full dimension (always a legal Pallas block size)."""
    if dim <= cap:
        return dim
    for align in aligns:
        t = (cap // align) * align
        while t >= align:
            if dim % t == 0:
                return t
            t -= align
    return dim


# ----------------------------------------------------------------------------
# Pallas kernels
# ----------------------------------------------------------------------------
def _proj_kernel(x_ref, w_ref, b_ref, o_ref, acc_ref):
    """Per-head projection: out[b,h,s,:] = x[b,s,:] @ w[h] + b[h]."""
    ki = pl.program_id(3)

    @pl.when(ki == 0)
    def _():
        acc_ref[...] = jnp.zeros(acc_ref.shape, acc_ref.dtype)

    acc_ref[...] += jnp.dot(x_ref[0], w_ref[0], preferred_element_type=jnp.float32)

    @pl.when(ki == pl.num_programs(3) - 1)
    def _():
        o_ref[0, 0] = (acc_ref[...] + b_ref[0]).astype(o_ref.dtype)


def _proj_rope_kernel(x_ref, w_ref, b_ref, cos_ref, sin_ref, o_ref, acc_ref):
    """Per-head projection with RoPE fused into the epilogue.

    Weight columns were pre-permuted to split layout (real half | imag half), so the
    rotation is y * cos2 + roll(y, D/2) * sin2 with cos2 = [cos|cos], sin2 = [-sin|sin].
    """
    ki = pl.program_id(3)

    @pl.when(ki == 0)
    def _():
        acc_ref[...] = jnp.zeros(acc_ref.shape, acc_ref.dtype)

    acc_ref[...] += jnp.dot(x_ref[0], w_ref[0], preferred_element_type=jnp.float32)

    @pl.when(ki == pl.num_programs(3) - 1)
    def _():
        y = acc_ref[...] + b_ref[0]                       # (ts, D) f32
        half = y.shape[-1] // 2
        y_rot = pltpu.roll(y, half, 1)                    # swap the two halves (XLU)
        o_ref[0, 0] = (y * cos_ref[...] + y_rot * sin_ref[...]).astype(o_ref.dtype)


def _merge_proj_kernel(a_ref, w_ref, b_ref, o_ref, acc_ref):
    """Output projection, reducing over heads: out[b,s,:] = sum_h a[b,h,s,:] @ wo[h]."""
    hi = pl.program_id(3)

    @pl.when(hi == 0)
    def _():
        acc_ref[...] = jnp.zeros(acc_ref.shape, acc_ref.dtype)

    acc_ref[...] += jnp.dot(a_ref[0, 0], w_ref[0], preferred_element_type=jnp.float32)

    @pl.when(hi == pl.num_programs(3) - 1)
    def _():
        o_ref[0] = (acc_ref[...] + b_ref[...]).astype(o_ref.dtype)


def _flash_attn_kernel(q_ref, k_ref, v_ref, o_ref, m_ref, l_ref, acc_ref, *,
                       is_causal, q_tile, kv_tile):
    """Flash attention with online softmax; scale already folded into Q weights."""
    ki = pl.program_id(3)
    nk = pl.num_programs(3)

    @pl.when(ki == 0)
    def _():
        m_ref[...] = jnp.full(m_ref.shape, -jnp.inf, m_ref.dtype)
        l_ref[...] = jnp.zeros(l_ref.shape, l_ref.dtype)
        acc_ref[...] = jnp.zeros(acc_ref.shape, acc_ref.dtype)

    q_start = pl.program_id(2) * q_tile
    k_start = ki * kv_tile

    def compute_block():
        q = q_ref[0, 0]                                   # (tq, Dk) bf16 (pre-scaled)
        k = k_ref[0, 0]                                   # (tk, Dk) bf16
        v = v_ref[0, 0]                                   # (tk, Dh) bf16
        s = lax.dot_general(q, k, (((1,), (1,)), ((), ())),
                            preferred_element_type=jnp.float32)   # (tq, tk) f32
        if is_causal:
            qpos = q_start + lax.broadcasted_iota(jnp.int32, s.shape, 0)
            kpos = k_start + lax.broadcasted_iota(jnp.int32, s.shape, 1)
            s = jnp.where(qpos >= kpos, s, -jnp.inf)
        m_prev = m_ref[...]
        m_new = jnp.maximum(m_prev, jnp.max(s, axis=-1, keepdims=True))
        alpha = jnp.exp(m_prev - m_new)
        p = jnp.exp(s - m_new)
        l_ref[...] = alpha * l_ref[...] + jnp.sum(p, axis=-1, keepdims=True)
        acc_ref[...] = alpha * acc_ref[...] + jnp.dot(
            p.astype(v.dtype), v, preferred_element_type=jnp.float32)
        m_ref[...] = m_new

    if is_causal:
        # skip KV blocks that lie entirely above the causal diagonal
        pl.when(k_start <= q_start + q_tile - 1)(compute_block)
    else:
        compute_block()

    @pl.when(ki == nk - 1)
    def _():
        inv_l = pl.reciprocal(l_ref[...], approx=True)
        o_ref[0, 0] = (acc_ref[...] * inv_l).astype(o_ref.dtype)


def _attn_weights_kernel(q_ref, k_ref, v_ref, o_ref, s_ref, *, is_causal, q_tile):
    """need_weights=True path: materializes softmax weights (inherently O(S^2) output)."""
    q = q_ref[0, 0]
    k = k_ref[0, 0]
    v = v_ref[0, 0]
    s = lax.dot_general(q, k, (((1,), (1,)), ((), ())),
                        preferred_element_type=jnp.float32)       # (tq, Sk)
    if is_causal:
        q_start = pl.program_id(2) * q_tile
        qpos = q_start + lax.broadcasted_iota(jnp.int32, s.shape, 0)
        kpos = lax.broadcasted_iota(jnp.int32, s.shape, 1)
        s = jnp.where(qpos >= kpos, s, -jnp.inf)
    m = jnp.max(s, axis=-1, keepdims=True)
    e = jnp.exp(s - m)
    # exact reciprocal here: the returned weights are an output of the module
    p = e * pl.reciprocal(jnp.sum(e, axis=-1, keepdims=True), approx=False)
    s_ref[0, 0] = p
    o_ref[0, 0] = jnp.dot(p.astype(v.dtype), v,
                          preferred_element_type=jnp.float32).astype(o_ref.dtype)


# ----------------------------------------------------------------------------
# pallas_call wrappers
# ----------------------------------------------------------------------------
def per_head_projection(x, w_h, b_h, cos2=None, sin2=None, *,
                        out_dtype=jnp.bfloat16, row_tile_cap=256, k_tile_cap=512):
    """x: (B, S, Din); w_h: (H, Din, Dout); b_h: (H, 1, Dout) -> (B, H, S, Dout)."""
    B, S, Din = x.shape
    H, _, Dout = w_h.shape
    ts = _pick_tile(S, row_tile_cap, (128, 8))
    tk = _pick_tile(Din, k_tile_cap, (128,))

    in_specs = [
        pl.BlockSpec((1, ts, tk), lambda b, h, si, ki: (b, si, ki)),
        pl.BlockSpec((1, tk, Dout), lambda b, h, si, ki: (h, ki, 0)),
        pl.BlockSpec((1, 1, Dout), lambda b, h, si, ki: (h, 0, 0)),
    ]
    args = [x, w_h, b_h]
    if cos2 is not None:
        in_specs += [pl.BlockSpec((ts, Dout), lambda b, h, si, ki: (si, 0)),
                     pl.BlockSpec((ts, Dout), lambda b, h, si, ki: (si, 0))]
        args += [cos2, sin2]
        kernel = _proj_rope_kernel
    else:
        kernel = _proj_kernel

    return pl.pallas_call(
        kernel,
        out_shape=jax.ShapeDtypeStruct((B, H, S, Dout), out_dtype),
        grid_spec=pltpu.PrefetchScalarGridSpec(
            num_scalar_prefetch=0,
            grid=(B, H, S // ts, Din // tk),
            in_specs=in_specs,
            out_specs=pl.BlockSpec((1, 1, ts, Dout), lambda b, h, si, ki: (b, h, si, 0)),
            scratch_shapes=[pltpu.VMEM((ts, Dout), jnp.float32)]),
        compiler_params=pltpu.CompilerParams(
            dimension_semantics=("parallel", "parallel", "parallel", "arbitrary")),
    )(*args)


def merge_heads_projection(a, w_h, b2d, *, out_dtype,
                           row_tile_cap=256, n_tile_cap=512):
    """a: (B, H, S, Dh); w_h: (H, Dh, N); b2d: (1, N) -> (B, S, N)."""
    B, H, S, Dh = a.shape
    N = w_h.shape[-1]
    ts = _pick_tile(S, row_tile_cap, (128, 8))
    tn = _pick_tile(N, n_tile_cap, (128,))

    return pl.pallas_call(
        _merge_proj_kernel,
        out_shape=jax.ShapeDtypeStruct((B, S, N), out_dtype),
        grid_spec=pltpu.PrefetchScalarGridSpec(
            num_scalar_prefetch=0,
            grid=(B, S // ts, N // tn, H),
            in_specs=[
                pl.BlockSpec((1, 1, ts, Dh), lambda b, si, ni, h: (b, h, si, 0)),
                pl.BlockSpec((1, Dh, tn), lambda b, si, ni, h: (h, 0, ni)),
                pl.BlockSpec((1, tn), lambda b, si, ni, h: (0, ni)),
            ],
            out_specs=pl.BlockSpec((1, ts, tn), lambda b, si, ni, h: (b, si, ni)),
            scratch_shapes=[pltpu.VMEM((ts, tn), jnp.float32)]),
        compiler_params=pltpu.CompilerParams(
            dimension_semantics=("parallel", "parallel", "parallel", "arbitrary")),
    )(a, w_h, b2d)


def flash_attention(xq, xk, xv, *, is_causal, n_rep_kv,
                    q_tile_cap=256, kv_tile_cap=512, out_dtype=jnp.bfloat16):
    """xq: (B, Hq, Sq, Dk); xk: (B, Hkv, Sk, Dk); xv: (B, Hkv, Sk, Dh)."""
    B, Hq, Sq, Dk = xq.shape
    _, Hkv, Sk, Dh = xv.shape
    tq = _pick_tile(Sq, q_tile_cap, (128, 8))
    tk = _pick_tile(Sk, kv_tile_cap, (128, 8))

    if is_causal:
        # clamp the KV block index for skipped (fully masked) blocks so the pipeline
        # dedups the DMA instead of fetching data we never use
        def kv_block(b, h, qi, ki):
            return (b, h // n_rep_kv, jnp.minimum(ki, (qi * tq + tq - 1) // tk), 0)
    else:
        def kv_block(b, h, qi, ki):
            return (b, h // n_rep_kv, ki, 0)

    kernel = partial(_flash_attn_kernel, is_causal=is_causal, q_tile=tq, kv_tile=tk)
    return pl.pallas_call(
        kernel,
        out_shape=jax.ShapeDtypeStruct((B, Hq, Sq, Dh), out_dtype),
        grid_spec=pltpu.PrefetchScalarGridSpec(
            num_scalar_prefetch=0,
            grid=(B, Hq, Sq // tq, Sk // tk),
            in_specs=[
                pl.BlockSpec((1, 1, tq, Dk), lambda b, h, qi, ki: (b, h, qi, 0)),
                pl.BlockSpec((1, 1, tk, Dk), kv_block),
                pl.BlockSpec((1, 1, tk, Dh), kv_block),
            ],
            out_specs=pl.BlockSpec((1, 1, tq, Dh), lambda b, h, qi, ki: (b, h, qi, 0)),
            scratch_shapes=[
                pltpu.VMEM((tq, 1), jnp.float32),    # running max
                pltpu.VMEM((tq, 1), jnp.float32),    # running denom
                pltpu.VMEM((tq, Dh), jnp.float32),   # output accumulator
            ]),
        compiler_params=pltpu.CompilerParams(
            dimension_semantics=("parallel", "parallel", "parallel", "arbitrary")),
    )(xq, xk, xv)


def attention_with_weights(xq, xk, xv, *, is_causal, n_rep_kv,
                           q_tile_cap=128, out_dtype=jnp.bfloat16):
    """need_weights=True path; also returns the (B, Hq, Sq, Sk) softmax weights."""
    B, Hq, Sq, Dk = xq.shape
    _, Hkv, Sk, Dh = xv.shape
    tq = _pick_tile(Sq, q_tile_cap, (128, 8))

    kernel = partial(_attn_weights_kernel, is_causal=is_causal, q_tile=tq)
    out, scores = pl.pallas_call(
        kernel,
        out_shape=(jax.ShapeDtypeStruct((B, Hq, Sq, Dh), out_dtype),
                   jax.ShapeDtypeStruct((B, Hq, Sq, Sk), jnp.float32)),
        grid_spec=pltpu.PrefetchScalarGridSpec(
            num_scalar_prefetch=0,
            grid=(B, Hq, Sq // tq),
            in_specs=[
                pl.BlockSpec((1, 1, tq, Dk), lambda b, h, qi: (b, h, qi, 0)),
                pl.BlockSpec((1, 1, Sk, Dk), lambda b, h, qi: (b, h // n_rep_kv, 0, 0)),
                pl.BlockSpec((1, 1, Sk, Dh), lambda b, h, qi: (b, h // n_rep_kv, 0, 0)),
            ],
            out_specs=(pl.BlockSpec((1, 1, tq, Dh), lambda b, h, qi: (b, h, qi, 0)),
                       pl.BlockSpec((1, 1, tq, Sk), lambda b, h, qi: (b, h, qi, 0)))),
        compiler_params=pltpu.CompilerParams(
            dimension_semantics=("parallel", "parallel", "parallel")),
    )(xq, xk, xv)
    return out, scores


# ----------------------------------------------------------------------------
# Attention module (parameter container + forward)
# ----------------------------------------------------------------------------
class AttentionPallas:
    def __init__(self, d_model, n_heads, dropout=0.0, key_dim=None, n_kv_heads=None,
                 add_bias_kv=False, add_bias_out=False, total_n_heads=None, *,
                 rng_key, compute_dtype=jnp.bfloat16):
        self.d_model = d_model
        self.n_heads = n_heads
        self.n_kv_heads = n_heads if n_kv_heads is None else n_kv_heads
        self.total_n_heads = n_heads if total_n_heads is None else total_n_heads
        self.key_dim = key_dim if key_dim is not None else d_model // self.total_n_heads
        self.n_rep_kv = self.n_heads // self.n_kv_heads
        self.head_dim = d_model // self.total_n_heads
        assert self.n_heads % self.n_kv_heads == 0
        assert self.total_n_heads * self.head_dim == d_model
        self.attn_scale = 1.0 / math.sqrt(self.head_dim)
        self.compute_dtype = compute_dtype
        n_out = self.n_heads * self.head_dim

        ks = jax.random.split(rng_key, 7)

        def u(k, shape, fan_in):
            bound = 1.0 / math.sqrt(fan_in)
            return jax.random.uniform(k, shape, jnp.float32, -bound, bound)

        # f32 master parameters in (in, out) layout (used by the jnp reference)
        self.wq = u(ks[0], (d_model, self.n_heads * self.key_dim), d_model)
        self.wk = u(ks[1], (d_model, self.n_kv_heads * self.key_dim), d_model)
        self.wv = u(ks[2], (d_model, self.n_kv_heads * self.head_dim), d_model)
        self.wo = u(ks[3], (n_out, n_out), n_out)
        self.bk = (u(ks[4], (self.n_kv_heads * self.key_dim,), d_model) if add_bias_kv
                   else jnp.zeros((self.n_kv_heads * self.key_dim,), jnp.float32))
        self.bv = (u(ks[5], (self.n_kv_heads * self.head_dim,), d_model) if add_bias_kv
                   else jnp.zeros((self.n_kv_heads * self.head_dim,), jnp.float32))
        self.bo = (u(ks[6], (n_out,), n_out) if add_bias_out
                   else jnp.zeros((n_out,), jnp.float32))

        # --- kernel-layout parameters ---------------------------------------
        # Q/K columns permuted per head to split RoPE layout (even indices first),
        # so the in-kernel rotation is a half-roll. Dot products q.k are invariant.
        perm = jnp.concatenate([jnp.arange(0, self.key_dim, 2),
                                jnp.arange(1, self.key_dim, 2)])

        def per_head(w, n_h, dh, permute):
            w = w.reshape(d_model, n_h, dh)
            if permute is not None:
                w = w[:, :, permute]
            return jnp.transpose(w, (1, 0, 2))            # (H, d_model, dh)

        # fold the softmax scale into the query projection (exact)
        self.wq_h = (per_head(self.wq, self.n_heads, self.key_dim, perm)
                     * self.attn_scale).astype(compute_dtype)
        self.wk_h = per_head(self.wk, self.n_kv_heads, self.key_dim, perm).astype(compute_dtype)
        self.wv_h = per_head(self.wv, self.n_kv_heads, self.head_dim, None).astype(compute_dtype)
        self.wo_h = self.wo.reshape(self.n_heads, self.head_dim, n_out).astype(compute_dtype)

        self.bq_h = jnp.zeros((self.n_heads, 1, self.key_dim), jnp.float32)  # wq has no bias
        self.bk_h = self.bk.reshape(self.n_kv_heads, 1, self.key_dim)[:, :, perm]
        self.bv_h = self.bv.reshape(self.n_kv_heads, 1, self.head_dim)
        self.bo_2d = self.bo.reshape(1, n_out)

    def __call__(self, query, key, value, freqs_cos=None, freqs_sin=None,
                 attn_mask=None, is_causal=False, need_weights=False):
        assert attn_mask is None  # TODO(synk): explicit attn_mask tensors not implemented
        bsz, qlen, _ = query.shape
        _, klen, _ = key.shape

        use_rope = freqs_cos is not None and freqs_sin is not None
        if use_rope:
            assert qlen == klen and freqs_cos.shape == (qlen, self.key_dim // 2)
            cos2 = jnp.concatenate([freqs_cos, freqs_cos], axis=-1).astype(jnp.float32)
            sin2 = jnp.concatenate([-freqs_sin, freqs_sin], axis=-1).astype(jnp.float32)
        else:
            cos2 = sin2 = None

        qb = query.astype(self.compute_dtype)
        kb = key.astype(self.compute_dtype)
        vb = value.astype(self.compute_dtype)

        # projections (+ fused RoPE for q/k), written directly in (B, H, S, D) layout
        xq = per_head_projection(qb, self.wq_h, self.bq_h, cos2, sin2)   # (B, Hq, Sq, Dk)
        xk = per_head_projection(kb, self.wk_h, self.bk_h, cos2, sin2)   # (B, Hkv, Sk, Dk)
        xv = per_head_projection(vb, self.wv_h, self.bv_h)               # (B, Hkv, Sk, Dh)

        if need_weights:
            attn, scores = attention_with_weights(
                xq, xk, xv, is_causal=is_causal, n_rep_kv=self.n_rep_kv)
        else:
            attn = flash_attention(
                xq, xk, xv, is_causal=is_causal, n_rep_kv=self.n_rep_kv)
            scores = None

        out = merge_heads_projection(attn, self.wo_h, self.bo_2d, out_dtype=query.dtype)
        return out, scores


# ----------------------------------------------------------------------------
# Reference (pure jnp, f32, faithful to the PyTorch module) for correctness check
# ----------------------------------------------------------------------------
def _rope_interleaved(xq, xk, freqs_cos, freqs_sin):
    def rot(x):
        xr = x[..., 0::2]
        xi = x[..., 1::2]
        c = freqs_cos[None, :, None, :]
        s = freqs_sin[None, :, None, :]
        out_r = xr * c - xi * s
        out_i = xr * s + xi * c
        return jnp.stack([out_r, out_i], axis=-1).reshape(x.shape)
    return rot(xq.astype(jnp.float32)), rot(xk.astype(jnp.float32))


def reference_forward(mod, q, k, v, freqs_cos, freqs_sin, is_causal):
    B, Sq, _ = q.shape
    _, Sk, _ = k.shape
    xq = q.reshape(-1, mod.d_model) @ mod.wq
    xk = k.reshape(-1, mod.d_model) @ mod.wk + mod.bk
    xv = v.reshape(-1, mod.d_model) @ mod.wv + mod.bv
    xq = xq.reshape(B, Sq, mod.n_heads, mod.key_dim)
    xk = xk.reshape(B, Sk, mod.n_kv_heads, mod.key_dim)
    xv = xv.reshape(B, Sk, mod.n_kv_heads, mod.head_dim)
    if freqs_cos is not None and freqs_sin is not None:
        xq, xk = _rope_interleaved(xq, xk, freqs_cos, freqs_sin)
    if mod.n_rep_kv != 1:
        xk = jnp.repeat(xk, mod.n_rep_kv, axis=2)
        xv = jnp.repeat(xv, mod.n_rep_kv, axis=2)
    xq, xk, xv = (jnp.transpose(t, (0, 2, 1, 3)) for t in (xq, xk, xv))
    scores = jnp.einsum('bhqd,bhkd->bhqk', xq, xk) * mod.attn_scale
    if is_causal:
        mask = jnp.tril(jnp.ones((Sq, Sk), bool))
        scores = jnp.where(mask[None, None], scores, -jnp.inf)
    scores = jax.nn.softmax(scores, axis=-1)
    out = jnp.einsum('bhqk,bhkd->bhqd', scores, xv)
    out = jnp.transpose(out, (0, 2, 1, 3)).reshape(B, Sq, -1)
    out = out @ mod.wo + mod.bo
    return out, scores


if __name__ == "__main__":
    key = jax.random.PRNGKey(0)
    k_mod, k_q, k_k, k_v = jax.random.split(key, 4)

    bsz, seq, d_model, n_heads, n_kv_heads = 2, 8, 32, 4, 2
    mod = AttentionPallas(d_model=d_model, n_heads=n_heads, dropout=0.0,
                          n_kv_heads=n_kv_heads, add_bias_kv=True,
                          add_bias_out=True, rng_key=k_mod)

    query = jax.random.normal(k_q, (bsz, seq, d_model), jnp.float32)
    keyt = jax.random.normal(k_k, (bsz, seq, d_model), jnp.float32)
    value = jax.random.normal(k_v, (bsz, seq, d_model), jnp.float32)

    # RoPE frequencies: shape (seq, key_dim // 2)
    half = mod.key_dim // 2
    inv_freq = 1.0 / (10000.0 ** (jnp.arange(0, half, dtype=jnp.float32) / half))
    t = jnp.arange(seq, dtype=jnp.float32)
    freqs = jnp.outer(t, inv_freq)
    freqs_cos, freqs_sin = jnp.cos(freqs), jnp.sin(freqs)

    # fast path: flash attention, no scores materialized
    out_fast, scores_none = mod(query, keyt, value, freqs_cos, freqs_sin,
                                is_causal=True, need_weights=False)
    out_fast = jax.block_until_ready(out_fast)
    assert scores_none is None

    # need_weights path: also returns softmax weights
    out_w, scores = mod(query, keyt, value, freqs_cos, freqs_sin,
                        is_causal=True, need_weights=True)
    out_w = jax.block_until_ready(out_w)
    scores = jax.block_until_ready(scores)

    ref_out, ref_scores = reference_forward(mod, query, keyt, value,
                                            freqs_cos, freqs_sin, True)

    assert out_fast.shape == (bsz, seq, d_model)
    assert out_w.shape == (bsz, seq, d_model)
    assert scores.shape == (bsz, n_heads, seq, seq)
    # bf16 MXU inputs (f32 accumulation) -> loosened tolerance vs the f32 reference
    assert jnp.allclose(out_fast, ref_out, atol=5e-2, rtol=5e-2), \
        float(jnp.max(jnp.abs(out_fast - ref_out)))
    assert jnp.allclose(out_w, ref_out, atol=5e-2, rtol=5e-2), \
        float(jnp.max(jnp.abs(out_w - ref_out)))
    assert jnp.allclose(scores, ref_scores, atol=3e-2, rtol=3e-2), \
        float(jnp.max(jnp.abs(scores - ref_scores)))

    print("KERNEL_OK")
</pallas_src>

<mosaic_0001>
module attributes {stable_mosaic.version = 11 : i64} {
  func.func @_proj_rope_kernel(%arg0: i32, %arg1: i32, %arg2: i32, %arg3: i32, %arg4: memref<1x8x32xbf16, #tpu.memory_space<vmem>>, %arg5: memref<1x32x8xbf16, #tpu.memory_space<vmem>>, %arg6: memref<1x1x8xf32, #tpu.memory_space<vmem>>, %arg7: memref<8x8xf32, #tpu.memory_space<vmem>>, %arg8: memref<8x8xf32, #tpu.memory_space<vmem>>, %arg9: memref<1x1x8x8xbf16, #tpu.memory_space<vmem>>, %arg10: memref<8x8xf32, #tpu.memory_space<vmem>>) attributes {dimension_semantics = [#tpu.dimension_semantics<parallel>, #tpu.dimension_semantics<parallel>, #tpu.dimension_semantics<parallel>, #tpu.dimension_semantics<arbitrary>], iteration_bounds = array<i64: 2, 4, 1, 1>, scalar_prefetch = 0 : i64, scratch_operands = 1 : i64, tpu.core_type = #tpu.core_type<tc>, window_params = [{transform_indices = @transform_0, window_bounds = array<i64: 1, 8, 32>}, {transform_indices = @transform_1, window_bounds = array<i64: 1, 32, 8>}, {transform_indices = @transform_2, window_bounds = array<i64: 1, 1, 8>}, {transform_indices = @transform_3, window_bounds = array<i64: 8, 8>}, {transform_indices = @transform_4, window_bounds = array<i64: 8, 8>}, {transform_indices = @transform_5, window_bounds = array<i64: 1, 1, 8, 8>}]} {
    %c0_i32 = arith.constant 0 : i32
    %0 = arith.cmpi eq, %arg3, %c0_i32 : i32
    %1 = arith.extui %0 : i1 to i32
    %c0_i32_0 = arith.constant 0 : i32
    %2 = arith.cmpi ne, %1, %c0_i32_0 : i32
    scf.if %2 {
      %cst_12 = arith.constant 0.000000e+00 : f32
      %14 = vector.broadcast %cst_12 : f32 to vector<8x8xf32>
      %c0_13 = arith.constant 0 : index
      %c0_14 = arith.constant 0 : index
      %15 = vector.load %arg10[%c0_13, %c0_14] : memref<8x8xf32, #tpu.memory_space<vmem>>, vector<8x8xf32>
      tpu.vector_store %arg10[%c0_13, %c0_14], %14 {strides = array<i32>} : memref<8x8xf32, #tpu.memory_space<vmem>>, vector<8x8xf32>,
    } else {
    }
    %c0 = arith.constant 0 : index
    %c0_1 = arith.constant 0 : index
    %3 = vector.load %arg10[%c0, %c0_1] : memref<8x8xf32, #tpu.memory_space<vmem>>, vector<8x8xf32>
    %c0_2 = arith.constant 0 : index
    %c0_3 = arith.constant 0 : index
    %c0_4 = arith.constant 0 : index
    %4 = vector.load %arg4[%c0_2, %c0_3, %c0_4] : memref<1x8x32xbf16, #tpu.memory_space<vmem>>, vector<1x8x32xbf16>
    %5 = vector.shape_cast %4 : vector<1x8x32xbf16> to vector<8x32xbf16>
    %c0_5 = arith.constant 0 : index
    %c0_6 = arith.constant 0 : index
    %c0_7 = arith.constant 0 : index
    %6 = vector.load %arg5[%c0_5, %c0_6, %c0_7] : memref<1x32x8xbf16, #tpu.memory_space<vmem>>, vector<1x32x8xbf16>
    %7 = vector.shape_cast %6 : vector<1x32x8xbf16> to vector<32x8xbf16>
    %cst = arith.constant dense<0.000000e+00> : vector<8x8xf32>
    %8 = tpu.matmul %5, %7, %cst {dimension_numbers = #tpu.dot_dimension_numbers<[1], [0], [0], [1], [0, 0, 1, 1], [], []>} : vector<8x32xbf16>, vector<32x8xbf16>, vector<8x8xf32> -> vector<8x8xf32>
    %9 = arith.addf %3, %8 : vector<8x8xf32>
    %c0_8 = arith.constant 0 : index
    %c0_9 = arith.constant 0 : index
    %10 = vector.load %arg10[%c0_8, %c0_9] : memref<8x8xf32, #tpu.memory_space<vmem>>, vector<8x8xf32>
    tpu.vector_store %arg10[%c0_8, %c0_9], %9 {strides = array<i32>} : memref<8x8xf32, #tpu.memory_space<vmem>>, vector<8x8xf32>,
    %c0_i32_10 = arith.constant 0 : i32
    %11 = arith.cmpi eq, %arg3, %c0_i32_10 : i32
    %12 = arith.extui %11 : i1 to i32
    %c0_i32_11 = arith.constant 0 : i32
    %13 = arith.cmpi ne, %12, %c0_i32_11 : i32
    scf.if %13 {
      %c0_12 = arith.constant 0 : index
      %c0_13 = arith.constant 0 : index
      %14 = vector.load %arg10[%c0_12, %c0_13] : memref<8x8xf32, #tpu.memory_space<vmem>>, vector<8x8xf32>
      %c0_14 = arith.constant 0 : index
      %c0_15 = arith.constant 0 : index
      %c0_16 = arith.constant 0 : index
      %15 = vector.load %arg6[%c0_14, %c0_15, %c0_16] : memref<1x1x8xf32, #tpu.memory_space<vmem>>, vector<1x1x8xf32>
      %16 = vector.shape_cast %15 : vector<1x1x8xf32> to vector<1x8xf32>
      %17 = vector.broadcast %16 : vector<1x8xf32> to vector<8x8xf32>
      %18 = arith.addf %14, %17 : vector<8x8xf32>
      %c4_i32 = arith.constant 4 : i32
      %19 = tpu.dynamic_rotate %18 by %c4_i32 dim 1 : vector<8x8xf32>, i32 -> vector<8x8xf32>
      %c0_17 = arith.constant 0 : index
      %c0_18 = arith.constant 0 : index
      %20 = vector.load %arg7[%c0_17, %c0_18] : memref<8x8xf32, #tpu.memory_space<vmem>>, vector<8x8xf32>
      %21 = arith.mulf %18, %20 : vector<8x8xf32>
      %c0_19 = arith.constant 0 : index
      %c0_20 = arith.constant 0 : index
      %22 = vector.load %arg8[%c0_19, %c0_20] : memref<8x8xf32, #tpu.memory_space<vmem>>, vector<8x8xf32>
      %23 = arith.mulf %19, %22 : vector<8x8xf32>
      %24 = arith.addf %21, %23 : vector<8x8xf32>
      %25 = arith.truncf %24 : vector<8x8xf32> to vector<8x8xbf16>
      %c0_21 = arith.constant 0 : index
      %c0_22 = arith.constant 0 : index
      %c0_23 = arith.constant 0 : index
      %c0_24 = arith.constant 0 : index
      %26 = vector.load %arg9[%c0_21, %c0_22, %c0_23, %c0_24] : memref<1x1x8x8xbf16, #tpu.memory_space<vmem>>, vector<1x1x8x8xbf16>
      %27 = vector.shape_cast %26 : vector<1x1x8x8xbf16> to vector<8x8xbf16>
      %28 = vector.shape_cast %25 : vector<8x8xbf16> to vector<1x1x8x8xbf16>
      tpu.vector_store %arg9[%c0_21, %c0_22, %c0_23, %c0_24], %28 {strides = array<i32>} : memref<1x1x8x8xbf16, #tpu.memory_space<vmem>>, vector<1x1x8x8xbf16>,
    } else {
    }
    return
  }
  func.func @transform_0(%arg0: i32, %arg1: i32, %arg2: i32, %arg3: i32) -> (i32, i32, i32) {
    %c0_i32 = arith.constant 0 : i32
    return %arg0, %arg2, %arg3 : i32, i32, i32
  }
  func.func @transform_1(%arg0: i32, %arg1: i32, %arg2: i32, %arg3: i32) -> (i32, i32, i32) {
    %c0_i32 = arith.constant 0 : i32
    %c0_i32_0 = arith.constant 0 : i32
    return %arg1, %arg3, %c0_i32 : i32, i32, i32
  }
  func.func @transform_2(%arg0: i32, %arg1: i32, %arg2: i32, %arg3: i32) -> (i32, i32, i32) {
    %c0_i32 = arith.constant 0 : i32
    %c0_i32_0 = arith.constant 0 : i32
    %c0_i32_1 = arith.constant 0 : i32
    return %arg1, %c0_i32, %c0_i32_0 : i32, i32, i32
  }
  func.func @transform_3(%arg0: i32, %arg1: i32, %arg2: i32, %arg3: i32) -> (i32, i32) {
    %c0_i32 = arith.constant 0 : i32
    %c0_i32_0 = arith.constant 0 : i32
    return %arg2, %c0_i32 : i32, i32
  }
  func.func @transform_4(%arg0: i32, %arg1: i32, %arg2: i32, %arg3: i32) -> (i32, i32) {
    %c0_i32 = arith.constant 0 : i32
    %c0_i32_0 = arith.constant 0 : i32
    return %arg2, %c0_i32 : i32, i32
  }
  func.func @transform_5(%arg0: i32, %arg1: i32, %arg2: i32, %arg3: i32) -> (i32, i32, i32, i32) {
    %c0_i32 = arith.constant 0 : i32
    %c0_i32_0 = arith.constant 0 : i32
    return %arg0, %arg1, %arg2, %c0_i32 : i32, i32, i32, i32
  }
}

</mosaic_0001>

<llo_original>
// kernel: tpu_custom_call.1
$region0: #{tpu_custom_call.1}
  #allocation0 [shape = 'u32[]', space=smem, size = 0x4, offset = 0x4, fixed_abs, tag = 'smem constant byte address 0x4 - core index']
  #allocation1 [shape = 'u32[144,128]{1,0:T(1,128)}', space=vmem, size = 0x12000, scoped, tag = 'internal scratch']
  #allocation2 [shape = 'f32[8,8]{1,0:T(8,128)}', space=vmem, size = 0x1000, scoped, tag = 'scratch operand']
  %s0 = inlined_call_operand.vmem [shape: bf16[2,8,32], index: 0, kind: input, shape index: {}]
  %s1 = inlined_call_operand.vmem [shape: bf16[4,32,8], index: 1, kind: input, shape index: {}]
  %s2 = inlined_call_operand.vmem [shape: f32[4,1,8], index: 2, kind: input, shape index: {}]
  %s3 = inlined_call_operand.vmem [shape: f32[8,8], index: 3, kind: input, shape index: {}]
  %s4 = inlined_call_operand.vmem [shape: f32[8,8], index: 4, kind: input, shape index: {}]
  %s5 = inlined_call_operand.hbm [shape: bf16[2,4,8,8], index: 5, kind: output, shape index: {}]
  %s6 = sld [smem:[#allocation0]]
  $region61: #{tpu_custom_call.1} parent=0
    _
  %s8 = ssub.s32 1, %s6
  %s9 = scalar_select 0, %s8, %s6
  $region1: #{tpu_custom_call.1} parent=0
    #allocation3 [shape = 'u8[4096]{0}', space=vmem, size = 0x1000, scoped, tag = 'output window, operand 0']
    #allocation4 [shape = 's32[2]{0}', space=sflag, size = 0x8, scoped, tag = 'scoped memory for tpu_custom_call.1']
    %10 = vsyncpa [#allocation4], 0
    %s11 = scalar_lea.sflag [#allocation4], 1
    %12 = vsyncpa %s11, 0
    loop: start=0, step=1, limit=10
    $region2: #{tpu_custom_call.1} parent=1 // loop_pre_header
      _
    $region3: #{tpu_custom_call.1} parent=1 // loop_header
      %s14 = sphi 0, %s18
      %p15 = scmp.ge.s32.totalorder %s14, 10
      %s21 = sphi 0, %s47
      %s22 = sphi 0, %s43
      %s23 = sphi 0, %s39
      %s24 = sphi 0, %s35
      %s25 = sphi 0, %s21
      %s26 = sphi 0, %s22
      %s27 = sphi 0, %s23
      %s28 = sphi 0, %s24
      %s29 = sphi 0, %s25
      %s30 = sphi 0, %s26
      %s31 = sphi 0, %s27
      %s32 = sphi 0, %s28
      %s54 = sphi 0, %s56
      %s57 = sphi 0, %s54
      %s58 = sphi 0, %s57
      %s74 = sphi 0, %s58
      %s82 = sphi 0, %s84
      %s85 = sphi 0, %s82
      %s86 = sphi 0, %s85
      %s102 = sphi 0, %s86
      %s108 = sphi 0, %s110
      %s111 = sphi 0, %s108
      %s112 = sphi 0, %s111
      %s128 = sphi 0, %s112
      %s134 = sphi 0, %s136
      %s137 = sphi 0, %s134
      %s138 = sphi 0, %s137
      %s154 = sphi 0, %s138
      %s160 = sphi 0, %s162
      %s163 = sphi 0, %s160
      %s164 = sphi 0, %s163
      %s180 = sphi 0, %s164
      %s190 = sphi 0, %s192
      %s193 = sphi 0, %s190
      %s194 = sphi 0, %s193
      %s210 = sphi 0, %s194
    $region4: #{tpu_custom_call.1} parent=1 // loop_header_branch
      %17 = sbr.rel (%p15) target = $region8
    $region5: #{tpu_custom_call.1} parent=1 // loop_body
      %s19 = ssub.s32 %s14, 1
      %s20 = ssub.s32 %s14, 2
      %s33 = sadd.s32 1, %s24
      %p34 = scmp.ge.s32.totalorder %s33, 1
      %s35 = scalar_select %p34, 0, %s33
      %s36 = sadd.s32 1, %s23
      %s37 = scalar_select %p34, %s36, %s23
      %p38 = scmp.ge.s32.totalorder %s37, 1
      %s39 = scalar_select %p38, 0, %s37
      %s40 = sadd.s32 1, %s22
      %s41 = scalar_select %p38, %s40, %s22
      %p42 = scmp.ge.s32.totalorder %s41, 4
      %s43 = scalar_select %p42, 0, %s41
      %s44 = sadd.s32 1, %s21
      %s45 = scalar_select %p42, %s44, %s21
      %p46 = scmp.ge.s32.totalorder %s45, 2
      %s47 = scalar_select %p46, 0, %s45
      %s48 = ssub.s32 %s21, %s47
      %s49 = ssub.s32 %s23, %s39
      %s50 = sor.u32 %s48, %s49
      %s51 = ssub.s32 %s24, %s35
      %s52 = sor.u32 %s50, %s51
      %p53 = scmp.eq.s32.totalorder %s52, 0
      %s55 = sadd.s32 %s54, 1
      %s56 = scalar_select %p53, %s54, %s55
      %p59 = pneg %p53
      %p60 = scmp.eq.s32.totalorder %s14, 7
      %p61 = por %p59, %p60
      %p62 = scmp.ne.s32.totalorder %s54, %s57
      %p63 = scmp.eq.s32.totalorder %s14, 0
      %p64 = por %p62, %p63
      %p65 = scmp.ne.s32.totalorder %s54, %s57
      %p66 = scmp.eq.s32.totalorder %s19, 7
      %p67 = por %p65, %p66
      %p68 = scmp.ne.s32.totalorder %s57, %s58
      %p69 = scmp.eq.s32.totalorder %s19, 0
      %p70 = por %p68, %p69
      %p71 = scmp.ne.s32.totalorder %s57, %s58
      %p72 = scmp.eq.s32.totalorder %s20, 7
      %p73 = por %p71, %p72
      %p75 = scmp.ne.s32.totalorder %s58, %s74
      %p76 = scmp.eq.s32.totalorder %s20, 0
      %p77 = por %p75, %p76
      %s78 = ssub.s32 %s22, %s43
      %s79 = ssub.s32 %s24, %s35
      %s80 = sor.u32 %s78, %s79
      %p81 = scmp.eq.s32.totalorder %s80, 0
      %s83 = sadd.s32 %s82, 1
      %s84 = scalar_select %p81, %s82, %s83
      %p87 = pneg %p81
      %p88 = scmp.eq.s32.totalorder %s14, 7
      %p89 = por %p87, %p88
      %p90 = scmp.ne.s32.totalorder %s82, %s85
      %p91 = scmp.eq.s32.totalorder %s14, 0
      %p92 = por %p90, %p91
      %p93 = scmp.ne.s32.totalorder %s82, %s85
      %p94 = scmp.eq.s32.totalorder %s19, 7
      %p95 = por %p93, %p94
      %p96 = scmp.ne.s32.totalorder %s85, %s86
      %p97 = scmp.eq.s32.totalorder %s19, 0
      %p98 = por %p96, %p97
      %p99 = scmp.ne.s32.totalorder %s85, %s86
      %p100 = scmp.eq.s32.totalorder %s20, 7
      %p101 = por %p99, %p100
      %p103 = scmp.ne.s32.totalorder %s86, %s102
      %p104 = scmp.eq.s32.totalorder %s20, 0
      %p105 = por %p103, %p104
      %s106 = ssub.s32 %s22, %s43
      %p107 = scmp.eq.s32.totalorder %s106, 0
      %s109 = sadd.s32 %s108, 1
      %s110 = scalar_select %p107, %s108, %s109
      %p113 = pneg %p107
      %p114 = scmp.eq.s32.totalorder %s14, 7
      %p115 = por %p113, %p114
      %p116 = scmp.ne.s32.totalorder %s108, %s111
      %p117 = scmp.eq.s32.totalorder %s14, 0
      %p118 = por %p116, %p117
      %p119 = scmp.ne.s32.totalorder %s108, %s111
      %p120 = scmp.eq.s32.totalorder %s19, 7
      %p121 = por %p119, %p120
      %p122 = scmp.ne.s32.totalorder %s111, %s112
      %p123 = scmp.eq.s32.totalorder %s19, 0
      %p124 = por %p122, %p123
      %p125 = scmp.ne.s32.totalorder %s111, %s112
      %p126 = scmp.eq.s32.totalorder %s20, 7
      %p127 = por %p125, %p126
      %p129 = scmp.ne.s32.totalorder %s112, %s128
      %p130 = scmp.eq.s32.totalorder %s20, 0
      %p131 = por %p129, %p130
      %s132 = ssub.s32 %s23, %s39
      %p133 = scmp.eq.s32.totalorder %s132, 0
      %s135 = sadd.s32 %s134, 1
      %s136 = scalar_select %p133, %s134, %s135
      %p139 = pneg %p133
      %p140 = scmp.eq.s32.totalorder %s14, 7
      %p141 = por %p139, %p140
      %p142 = scmp.ne.s32.totalorder %s134, %s137
      %p143 = scmp.eq.s32.totalorder %s14, 0
      %p144 = por %p142, %p143
      %p145 = scmp.ne.s32.totalorder %s134, %s137
      %p146 = scmp.eq.s32.totalorder %s19, 7
      %p147 = por %p145, %p146
      %p148 = scmp.ne.s32.totalorder %s137, %s138
      %p149 = scmp.eq.s32.totalorder %s19, 0
      %p150 = por %p148, %p149
      %p151 = scmp.ne.s32.totalorder %s137, %s138
      %p152 = scmp.eq.s32.totalorder %s20, 7
      %p153 = por %p151, %p152
      %p155 = scmp.ne.s32.totalorder %s138, %s154
      %p156 = scmp.eq.s32.totalorder %s20, 0
      %p157 = por %p155, %p156
      %s158 = ssub.s32 %s23, %s39
      %p159 = scmp.eq.s32.totalorder %s158, 0
      %s161 = sadd.s32 %s160, 1
      %s162 = scalar_select %p159, %s160, %s161
      %p165 = pneg %p159
      %p166 = scmp.eq.s32.totalorder %s14, 7
      %p167 = por %p165, %p166
      %p168 = scmp.ne.s32.totalorder %s160, %s163
      %p169 = scmp.eq.s32.totalorder %s14, 0
      %p170 = por %p168, %p169
      %p171 = scmp.ne.s32.totalorder %s160, %s163
      %p172 = scmp.eq.s32.totalorder %s19, 7
      %p173 = por %p171, %p172
      %p174 = scmp.ne.s32.totalorder %s163, %s164
      %p175 = scmp.eq.s32.totalorder %s19, 0
      %p176 = por %p174, %p175
      %p177 = scmp.ne.s32.totalorder %s163, %s164
      %p178 = scmp.eq.s32.totalorder %s20, 7
      %p179 = por %p177, %p178
      %p181 = scmp.ne.s32.totalorder %s164, %s180
      %p182 = scmp.eq.s32.totalorder %s20, 0
      %p183 = por %p181, %p182
      %s184 = ssub.s32 %s21, %s47
      %s185 = ssub.s32 %s22, %s43
      %s186 = sor.u32 %s184, %s185
      %s187 = ssub.s32 %s23, %s39
      %s188 = sor.u32 %s186, %s187
      %p189 = scmp.eq.s32.totalorder %s188, 0
      %s191 = sadd.s32 %s190, 1
      %s192 = scalar_select %p189, %s190, %s191
      %p195 = pneg %p189
      %p196 = scmp.eq.s32.totalorder %s14, 7
      %p197 = por %p195, %p196
      %p198 = scmp.ne.s32.totalorder %s190, %s193
      %p199 = scmp.eq.s32.totalorder %s14, 0
      %p200 = por %p198, %p199
      %p201 = scmp.ne.s32.totalorder %s190, %s193
      %p202 = scmp.eq.s32.totalorder %s19, 7
      %p203 = por %p201, %p202
      %p204 = scmp.ne.s32.totalorder %s193, %s194
      %p205 = scmp.eq.s32.totalorder %s19, 0
      %p206 = por %p204, %p205
      %p207 = scmp.ne.s32.totalorder %s193, %s194
      %p208 = scmp.eq.s32.totalorder %s20, 7
      %p209 = por %p207, %p208
      %p211 = scmp.ne.s32.totalorder %s194, %s210
      %p212 = scmp.eq.s32.totalorder %s20, 0
      %p213 = por %p211, %p212
      %p214 = scmp.le.s32.totalorder 1, %s14
      %p215 = scmp.lt.s32.totalorder %s14, 9
      %p216 = pnand %p214, %p215
      %p217 = pneg %p216
      // Predicated region
      $region9: #{tpu_custom_call.1} parent=5 // pred_check
        _
      $region10: #{tpu_custom_call.1} parent=5 // pred_check_branch
        %219 = sbr.rel (%p216) target = $region12
      $region11: #{tpu_custom_call.1} parent=5 // pred_region
        %s220 = ssub.s32 %s14, 1
        // Predicated region
        $region13: #{tpu_custom_call.1} parent=11 // pred_check
          %p221 = pneg %p150
        $region14: #{tpu_custom_call.1} parent=11 // pred_check_branch
          %223 = sbr.rel (%p221) target = $region16
        $region15: #{tpu_custom_call.1} parent=11 // pred_region
          %p224 = scmp.lt.s32.totalorder %s27, 0
          %s225 = scalar_select %p224, %s27, 0
          %s226 = smul.addr %s225, 8
          %s227 = scalar_lea.vmem %s3, %s226
        $region16: #{tpu_custom_call.1} parent=11 // pred_fallthru
          _
        // Predicated region
        $region17: #{tpu_custom_call.1} parent=11 // pred_check
          %p228 = pneg %p176
        $region18: #{tpu_custom_call.1} parent=11 // pred_check_branch
          %230 = sbr.rel (%p228) target = $region20
        $region19: #{tpu_custom_call.1} parent=11 // pred_region
          %p231 = scmp.lt.s32.totalorder %s27, 0
          %s232 = scalar_select %p231, %s27, 0
          %s233 = smul.addr %s232, 8
          %s234 = scalar_lea.vmem %s4, %s233
        $region20: #{tpu_custom_call.1} parent=11 // pred_fallthru
          _
      $region12: #{tpu_custom_call.1} parent=5 // pred_fallthru
        _
      %p235 = scmp.lt.s32.totalorder %s14, 8
      // Predicated region
      $region21: #{tpu_custom_call.1} parent=5 // pred_check
        %p236 = pneg %p235
      $region22: #{tpu_custom_call.1} parent=5 // pred_check_branch
        %238 = sbr.rel (%p236) target = $region24
      $region23: #{tpu_custom_call.1} parent=5 // pred_region
        // Predicated region
        $region25: #{tpu_custom_call.1} parent=23 // pred_check
          %p239 = pneg %p64
        $region26: #{tpu_custom_call.1} parent=23 // pred_check_branch
          %241 = sbr.rel (%p239) target = $region28
        $region27: #{tpu_custom_call.1} parent=23 // pred_region
          %p242 = scmp.lt.s32.totalorder %s21, 1
          %s243 = scalar_select %p242, %s21, 1
          %p244 = scmp.lt.s32.totalorder %s23, 0
          %s245 = scalar_select %p244, %s23, 0
          %p246 = scmp.lt.s32.totalorder %s24, 0
          %s247 = scalar_select %p246, %s24, 0
          %s248 = sadd.s32 %s247, %s245
          %s249 = sadd.s32 %s248, %s243
          %s250 = smul.addr %s249, 4
          %s251 = scalar_lea.vmem %s0, %s250
        $region28: #{tpu_custom_call.1} parent=23 // pred_fallthru
          _
        // Predicated region
        $region29: #{tpu_custom_call.1} parent=23 // pred_check
          %p252 = pneg %p92
        $region30: #{tpu_custom_call.1} parent=23 // pred_check_branch
          %254 = sbr.rel (%p252) target = $region32
        $region31: #{tpu_custom_call.1} parent=23 // pred_region
          %s255 = smul.u32 4, %s24
          %p256 = scmp.lt.s32.totalorder %s22, 3
          %s257 = scalar_select %p256, %s22, 3
          %p258 = scmp.lt.s32.totalorder %s255, 3
          %s259 = scalar_select %p258, %s255, 3
          %s260 = smul.addr %s257, 4
          %s261 = sadd.s32 %s259, %s260
          %s262 = smul.addr %s261, 4
          %s263 = scalar_lea.vmem %s1, %s262
          %s264 = smul.u32 4, %s24
        $region32: #{tpu_custom_call.1} parent=23 // pred_fallthru
          _
        // Predicated region
        $region33: #{tpu_custom_call.1} parent=23 // pred_check
          %p265 = pneg %p118
        $region34: #{tpu_custom_call.1} parent=23 // pred_check_branch
          %267 = sbr.rel (%p265) target = $region36
        $region35: #{tpu_custom_call.1} parent=23 // pred_region
          %p268 = scmp.lt.s32.totalorder %s22, 3
          %s269 = scalar_select %p268, %s22, 3
          %s270 = scalar_lea.vmem %s2, %s269
        $region36: #{tpu_custom_call.1} parent=23 // pred_fallthru
          _
      $region24: #{tpu_custom_call.1} parent=5 // pred_fallthru
        _
      %p271 = scmp.le.s32.totalorder 1, %s14
      %p272 = scmp.lt.s32.totalorder %s14, 9
      %p273 = pnand %p271, %p272
      %p274 = pneg %p273
      // Predicated region
      $region37: #{tpu_custom_call.1} parent=5 // pred_check
        _
      $region38: #{tpu_custom_call.1} parent=5 // pred_check_branch
        %276 = sbr.rel (%p273) target = $region40
      $region39: #{tpu_custom_call.1} parent=5 // pred_region
        %s277 = ssub.s32 %s14, 1
        %p278 = scmp.lt.s32.totalorder %s25, 1
        %s279 = scalar_select %p278, %s25, 1
        %p280 = scmp.lt.s32.totalorder %s27, 0
        %s281 = scalar_select %p280, %s27, 0
        %p282 = scmp.lt.s32.totalorder %s28, 0
        %s283 = scalar_select %p282, %s28, 0
        %s284 = sadd.s32 %s283, %s281
        %s285 = sadd.s32 %s284, %s279
        %s286 = smul.addr %s285, 4
        %s287 = scalar_lea.vmem %s0, %s286
        %p288 = pneg %p70
        %p289 = pneg %p67
        %s290 = smul.u32 4, %s28
        %p291 = scmp.lt.s32.totalorder %s26, 3
        %s292 = scalar_select %p291, %s26, 3
        %p293 = scmp.lt.s32.totalorder %s290, 3
        %s294 = scalar_select %p293, %s290, 3
        %s295 = smul.addr %s292, 4
        %s296 = sadd.s32 %s294, %s295
        %s297 = smul.addr %s296, 4
        %s298 = scalar_lea.vmem %s1, %s297
        %p299 = pneg %p98
        %p300 = pneg %p95
        %p301 = scmp.lt.s32.totalorder %s26, 3
        %s302 = scalar_select %p301, %s26, 3
        %s303 = scalar_lea.vmem %s2, %s302
        %p304 = pneg %p124
        %p305 = pneg %p121
        %p306 = scmp.lt.s32.totalorder %s27, 0
        %s307 = scalar_select %p306, %s27, 0
        %s308 = smul.addr %s307, 8
        %s309 = scalar_lea.vmem %s3, %s308
        %p310 = pneg %p150
        %p311 = pneg %p147
        %p312 = scmp.lt.s32.totalorder %s27, 0
        %s313 = scalar_select %p312, %s27, 0
        %s314 = smul.addr %s313, 8
        %s315 = scalar_lea.vmem %s4, %s314
        %p316 = pneg %p176
        %p317 = pneg %p173
        %p318 = pneg %p206
        %p319 = pneg %p203
        %s320 = sand.u32 %s193, 1
        %s321 = scalar_lea.sflag [#allocation4], %s320
        %s322 = sand.u32 %s193, 1
        %s323 = smul.addr %s322, 4
        %s324 = scalar_lea.vmem [#allocation3], %s323
        %p325 = scmp.lt.s32.totalorder %s25, 1
        %s326 = scalar_select %p325, %s25, 1
        %p327 = scmp.lt.s32.totalorder %s27, 0
        %s328 = scalar_select %p327, %s27, 0
        %p329 = scmp.lt.s32.totalorder %s28, 0
        %s330 = scalar_select %p329, %s28, 0
        %s331 = sadd.s32 %s330, %s328
        %s332 = sadd.s32 %s331, %s326
        %s333 = smul.addr %s332, 4
        %s334 = scalar_lea.vmem %s0, %s333
        %s335 = smul.u32 4, %s28
        %p336 = scmp.lt.s32.totalorder %s26, 3
        %s337 = scalar_select %p336, %s26, 3
        %p338 = scmp.lt.s32.totalorder %s335, 3
        %s339 = scalar_select %p338, %s335, 3
        %s340 = smul.addr %s337, 4
        %s341 = sadd.s32 %s339, %s340
        %s342 = smul.addr %s341, 4
        %s343 = scalar_lea.vmem %s1, %s342
        %s344 = smul.u32 4, %s28
        %p345 = scmp.lt.s32.totalorder %s26, 3
        %s346 = scalar_select %p345, %s26, 3
        %s347 = scalar_lea.vmem %s2, %s346
        %p348 = scmp.lt.s32.totalorder %s27, 0
        %s349 = scalar_select %p348, %s27, 0
        %s350 = smul.addr %s349, 8
        %s351 = scalar_lea.vmem %s3, %s350
        %p352 = scmp.lt.s32.totalorder %s27, 0
        %s353 = scalar_select %p352, %s27, 0
        %s354 = smul.addr %s353, 8
        %s355 = scalar_lea.vmem %s4, %s354
        %p357 = scmp.eq.s32.totalorder %s28, 0
        // Predicated region
        $region41: #{tpu_custom_call.1} parent=39 // pred_check
          %p358 = pneg %p357
        $region42: #{tpu_custom_call.1} parent=39 // pred_check_branch
          %360 = sbr.rel (%p358) target = $region44
        $region43: #{tpu_custom_call.1} parent=39 // pred_region
          %vm361 = vcmask 64512
          %362 = vst.msk [vmem:[#allocation2] sm:$0xff] %vm361, 0.0
        $region44: #{tpu_custom_call.1} parent=39 // pred_fallthru
          _
        %v363 = vld [vmem:[#allocation2] sm:$0xff]
        %v364 = vld [vmem:[%s334] sm:$0xf]
        %v365 = vld [vmem:[%s343] sm:$0xf]
        %v366 = vld [vmem:[%s343 + $0x4] sm:$0xf]
        %v367 = vld [vmem:[%s343 + $0x8] sm:$0xf]
        %v368 = vld [vmem:[%s343 + $0xc] sm:$0xf]
        %v373 = vunpack.c.l.b16 %v365
        %v374 = vunpack.c.l.b16 %v366
        %v375 = vunpack.c.l.b16 %v367
        %v376 = vunpack.c.l.b16 %v368
        %v377 = vpack.c.b16 %v374, %v373
        %v378 = vpack.c.b16 %v376, %v375
        %vm381 = vcmask 261120
        %v383 = vsel %vm381, %v364, 0
        %385 = vmatprep.subr.bf16.mxu0 0
        %386 = vmatpush1.bf16.msra.mxu0 %v377
        %387 = vmatprep.subr.bf16.mxu0 0
        %388 = vmatpush1.bf16.msra.mxu0 %v378
        %389 = vmatprep.subr.bf16.mxu0 0
        %390 = vmatpush1.bf16.msra.mxu0 0
        %391 = vmatprep.subr.bf16.mxu0 0
        %392 = vmatpush1.bf16.msra.mxu0 0
        %393 = vmatprep.subr.bf16.mxu0 0
        %394 = vmatpush1.bf16.msra.mxu0 0
        %395 = vmatprep.subr.bf16.mxu0 0
        %396 = vmatpush1.bf16.msra.mxu0 0
        %397 = vmatprep.subr.bf16.mxu0 0
        %398 = vmatpush1.bf16.msra.mxu0 0
        %399 = vmatprep.subr.bf16.mxu0 0
        %400 = vmatpush1.bf16.msra.mxu0 0
        %401 = vmatprep.subr.bf16.mxu0 0
        %402 = vmatpush1.bf16.msra.mxu0 0
        %403 = vmatprep.subr.bf16.mxu0 0
        %404 = vmatpush1.bf16.msra.mxu0 0
        %405 = vmatprep.subr.bf16.mxu0 0
        %406 = vmatpush1.bf16.msra.mxu0 0
        %407 = vmatprep.subr.bf16.mxu0 0
        %408 = vmatpush1.bf16.msra.mxu0 0
        %409 = vmatprep.subr.bf16.mxu0 0
        %410 = vmatpush1.bf16.msra.mxu0 0
        %411 = vmatprep.subr.bf16.mxu0 0
        %412 = vmatpush1.bf16.msra.mxu0 0
        %413 = vmatprep.subr.bf16.mxu0 0
        %414 = vmatpush1.bf16.msra.mxu0 0
        %415 = vmatprep.subr.bf16.mxu0 0
        %416 = vmatpush1.bf16.msra.mxu0 0
        %417 = vmatprep.mubr.bf16.mxu0 0
        %418 = vmatmul.mubr.bf16.gmra.mrb[0].mxu0 %v383
        %v419 = vpop.f32.mrb[0].mxu0
        %v420 = vadd.f32 0.0, %v419
        %v421 = vpop.f32.mrb[0].mxu0
        %v422 = vpop.f32.mrb[0].mxu0
        %v423 = vpop.f32.mrb[0].mxu0
        %424 = vdwg.mxu0
        %v425 = vadd.f32 %v363, %v420
        %vm426 = vcmask 64512
        %427 = vst.msk [vmem:[#allocation2] sm:$0xff] %vm426, %v425
        // Predicated region
        $region45: #{tpu_custom_call.1} parent=39 // pred_check
          %p428 = pneg %p357
        $region46: #{tpu_custom_call.1} parent=39 // pred_check_branch
          %430 = sbr.rel (%p428) target = $region48
        $region47: #{tpu_custom_call.1} parent=39 // pred_region
          %v431 = vld [vmem:[#allocation2] sm:$0xff]
          %v432 = vld [vmem:[%s347] sm:$0x1]
          %v434 = vlaneseq
          %v435 = vshrl.u32 %v434, 7
          %v436 = vsub.s32 0, %v435
          %v437 = vrot.slane %v432, %v436
          %v439 = vadd.f32 %v431, %v437
          %vm440 = vcmask 1047616
          %441 = vrot.lane.b32.xlu0 %v439, 8
          %v442 = vpop.permute.xlu0 %441
          %v443 = vsel %vm440, %v442, %v439
          %444 = vrot.lane.b32.xlu0 %v443, 8
          %v445 = vpop.permute.xlu0 %444
          %v446 = vsel %vm440, %v445, %v439
          %v447 = vld [vmem:[%s351] sm:$0xff]
          %v448 = vmul.f32 %v439, %v447
          %v449 = vld [vmem:[%s355] sm:$0xff]
          %451 = vrot.lane.b32.xlu0 %v449, 4
          %v452 = vpop.permute.xlu0 %451
          %v454 = vmul.f32 %v446, %v452
          %456 = vrot.lane.b32.xlu0 %v454, 124
          %v457 = vpop.permute.xlu0 %456
          %v459 = vadd.f32 %v448, %v457
          %v460 = vpack.c.bf16 %v459, %v459
          %vm461 = vcmask 60416
          %462 = vst.msk [vmem:[%s324] sm:$0xf] %vm461, %v460
        $region48: #{tpu_custom_call.1} parent=39 // pred_fallthru
          _
        %s463 = sand.u32 %s193, 1
        %s464 = scalar_lea.sflag [#allocation4], %s463
        %s465 = sand.u32 %s193, 1
        %s466 = smul.addr %s465, 4
        %s467 = scalar_lea.vmem [#allocation3], %s466
        // Predicated region
        $region49: #{tpu_custom_call.1} parent=39 // pred_check
          %p468 = pneg %p203
        $region50: #{tpu_custom_call.1} parent=39 // pred_check_branch
          %470 = sbr.rel (%p468) target = $region52
        $region51: #{tpu_custom_call.1} parent=39 // pred_region
          %s472 = ssub.s32 64, 64
          %473 = vsyncadd %s464, %s472
          %s474 = sadd.s32 %s27, %s26
          %s475 = smul.addr %s25, 4
          %s476 = sadd.s32 %s474, %s475
          %s477 = smul.addr %s476, 64
          %s478 = scalar_lea.hbm %s5, %s477
          %s480 = sshll.u32 %s467, 4
          %s481 = int_to_ptr.vmem [resolvable:$true] %s480
          %483 = dma.vmem_to_hbm [thread:$0]  %s481, 64, %s478, %s464
        $region52: #{tpu_custom_call.1} parent=39 // pred_fallthru
          _
      $region40: #{tpu_custom_call.1} parent=5 // pred_fallthru
        _
      %p484 = scmp.le.s32.totalorder 2, %s14
      // Predicated region
      $region53: #{tpu_custom_call.1} parent=5 // pred_check
        %p485 = pneg %p484
      $region54: #{tpu_custom_call.1} parent=5 // pred_check_branch
        %487 = sbr.rel (%p485) target = $region56
      $region55: #{tpu_custom_call.1} parent=5 // pred_region
        %s488 = ssub.s32 %s14, 2
        // Predicated region
        $region57: #{tpu_custom_call.1} parent=55 // pred_check
          %p489 = pneg %p209
        $region58: #{tpu_custom_call.1} parent=55 // pred_check_branch
          %491 = sbr.rel (%p489) target = $region60
        $region59: #{tpu_custom_call.1} parent=55 // pred_region
          %s492 = sand.u32 %s194, 1
          %s493 = scalar_lea.sflag [#allocation4], %s492
          %s494 = sand.u32 %s194, 1
          %s495 = smul.addr %s494, 4
          %s496 = scalar_lea.vmem [#allocation3], %s495
          %497 = dma.done %s493, 64
        $region60: #{tpu_custom_call.1} parent=55 // pred_fallthru
          _
      $region56: #{tpu_custom_call.1} parent=5 // pred_fallthru
        _
    $region6: #{tpu_custom_call.1} parent=1 // loop_footer
      %s18 = sadd.s32 1, %s14
    $region7: #{tpu_custom_call.1} parent=1 // loop_footer_branch
      %13 = sbr.rel target = $region3
    $region8: #{tpu_custom_call.1} parent=1 // loop_exit
      _
    %498 = vsyncpa [#allocation4], 1
    %s499 = scalar_lea.sflag [#allocation4], 1
    %500 = vsyncpa %s499, 1

</llo_original>
